<compile_context>
chip_gen: v7x
topology: tpu7x:2x2x1
jax: 0.10.0
libtpu: 0.0.40
codegen_flags: <defaults>
</compile_context>

<pallas_src>
from functools import partial

import jax
import jax.numpy as jnp
from jax.experimental import pallas as pl
from jax.experimental.pallas import tpu as pltpu

code_dim = 4
categories = [3, 3, 4, 2]
input_dim = sum(categories)   # 12
HIDDEN_ENC = 64
HIDDEN_DEC = 12

LANE = 128


def _round_up(x, m):
    return ((x + m - 1) // m) * m


def autoencoder_kernel(x_ref,
                       w1_ref, b1_ref,
                       w2_ref, b2_ref,
                       w3_ref, b3_ref,
                       w4_ref, b4_ref,
                       out_ref):
    # Transposed, lane-dense layout: activations are [features, batch_tile]
    # (batch on the 128-lane axis).  Weights are [out, in]; each layer computes
    # h = W @ x + b, identical to PyTorch's x @ W.T + b.
    xt = x_ref[...]                                              # (12, TB) f32

    # --- encoder ---
    h1 = jnp.dot(w1_ref[...], xt, preferred_element_type=jnp.float32) + b1_ref[...]
    h1 = jnp.maximum(h1, 0.0)                                    # ReLU  (64, TB)
    z = jnp.dot(w2_ref[...], h1, preferred_element_type=jnp.float32) + b2_ref[...]
    z = jnp.tanh(z)                                              # Tanh  (4, TB)   (EUP)

    # --- decoder ---
    h2 = jnp.dot(w3_ref[...], z, preferred_element_type=jnp.float32) + b3_ref[...]
    h2 = jnp.maximum(h2, 0.0)                                    # ReLU  (12, TB)
    y = jnp.dot(w4_ref[...], h2, preferred_element_type=jnp.float32) + b4_ref[...]
    # Sigmoid: exp on EUP + approximate reciprocal on EUP (avoids VPU divide).
    y = pl.reciprocal(1.0 + jnp.exp(-y), approx=True)            # Sigmoid (12, TB)

    out_ref[...] = y


@partial(jax.jit, static_argnames=("tile_b",))
def autoencoder_forward(x, params, *, tile_b=8192):
    """x: [batch, 12] float32 -> [batch, 12] float32."""
    (w1, b1), (w2, b2), (w3, b3), (w4, b4) = params
    batch = x.shape[0]
    assert x.shape[1] == input_dim

    x = x.astype(jnp.float32)

    # Pad batch so it divides evenly into lane-aligned tiles, then put the
    # batch on the fast (lane) axis: x_t is [features, padded_batch].
    tile_b = min(tile_b, _round_up(batch, LANE))
    padded_batch = _round_up(batch, tile_b)
    if padded_batch != batch:
        x = jnp.pad(x, ((0, padded_batch - batch), (0, 0)))
    x_t = x.T                                                   # (12, padded_batch)

    num_tiles = padded_batch // tile_b

    def stream_spec(rows):
        # Streamed over the batch grid axis (lane-dense tiles, double-buffered).
        return pl.BlockSpec((rows, tile_b), lambda i: (0, i))

    def resident_spec(shape):
        # Constant block index -> Pallas keeps these tiny operands VMEM-resident
        # across grid steps instead of re-DMAing them each step.
        return pl.BlockSpec(shape, lambda i: (0,) * len(shape))

    out_t = pl.pallas_call(
        autoencoder_kernel,
        out_shape=jax.ShapeDtypeStruct((input_dim, padded_batch), jnp.float32),
        grid=(num_tiles,),
        in_specs=[
            stream_spec(input_dim),                        # x_t stream
            resident_spec(w1.shape), resident_spec(b1.shape),
            resident_spec(w2.shape), resident_spec(b2.shape),
            resident_spec(w3.shape), resident_spec(b3.shape),
            resident_spec(w4.shape), resident_spec(b4.shape),
        ],
        out_specs=stream_spec(input_dim),
        compiler_params=pltpu.CompilerParams(
            # Batch axis is embarrassingly parallel -> megacore sharding on v7x,
            # harmless no-op on single-TC v5e/v6e.
            dimension_semantics=("parallel",),
            # Explicit VMEM budget: well under v7x's 64 MiB physical; actual
            # usage at tile_b=8192 is ~1.5 MiB incl. double buffering.
            vmem_limit_bytes=32 * 1024 * 1024,
        ),
    )(x_t, w1, b1, w2, b2, w3, b3, w4, b4)

    return out_t.T[:batch]


def init_params(key):
    """PyTorch-style nn.Linear init: weight [out, in], bias kept [out, 1]."""
    def linear(key, fan_in, fan_out):
        kw, kb = jax.random.split(key)
        bound = 1.0 / jnp.sqrt(fan_in)
        w = jax.random.uniform(kw, (fan_out, fan_in), jnp.float32, -bound, bound)
        b = jax.random.uniform(kb, (fan_out, 1), jnp.float32, -bound, bound)
        return w, b

    k1, k2, k3, k4 = jax.random.split(key, 4)
    return (
        linear(k1, input_dim, HIDDEN_ENC),   # encoder Linear(12, 64)
        linear(k2, HIDDEN_ENC, code_dim),    # encoder Linear(64, 4)
        linear(k3, code_dim, HIDDEN_DEC),    # decoder Linear(4, 12)
        linear(k4, HIDDEN_DEC, input_dim),   # decoder Linear(12, 12)
    )


def reference_forward(x, params):
    (w1, b1), (w2, b2), (w3, b3), (w4, b4) = params
    h = jnp.maximum(x @ w1.T + b1[:, 0], 0.0)
    z = jnp.tanh(h @ w2.T + b2[:, 0])
    h = jnp.maximum(z @ w3.T + b3[:, 0], 0.0)
    return jax.nn.sigmoid(h @ w4.T + b4[:, 0])


if __name__ == "__main__":
    key = jax.random.PRNGKey(0)
    k_params, k_x1, k_x2 = jax.random.split(key, 3)

    params = init_params(k_params)

    # Small example consistent with the module: batch of 12-dim category rows.
    batch = 8
    x = jax.random.uniform(k_x1, (batch, input_dim), jnp.float32)

    out = jax.block_until_ready(autoencoder_forward(x, params))
    ref = reference_forward(x, params)
    assert out.shape == (batch, input_dim)
    assert jnp.allclose(out, ref, atol=2e-3, rtol=2e-3), "mismatch vs reference (small batch)"

    # Larger batch: exercises the pipelined batch grid (grid > 1) + padding path.
    batch2 = 3000
    x2 = jax.random.uniform(k_x2, (batch2, input_dim), jnp.float32)
    out2 = jax.block_until_ready(autoencoder_forward(x2, params, tile_b=1024))
    ref2 = reference_forward(x2, params)
    assert out2.shape == (batch2, input_dim)
    assert jnp.allclose(out2, ref2, atol=2e-3, rtol=2e-3), "mismatch vs reference (large batch)"

    print("KERNEL_OK")
</pallas_src>

<mosaic_0001>
module attributes {stable_mosaic.version = 11 : i64} {
  func.func @autoencoder_kernel(%arg0: i32, %arg1: memref<12x128xf32, #tpu.memory_space<vmem>>, %arg2: memref<64x12xf32, #tpu.memory_space<vmem>>, %arg3: memref<64x1xf32, #tpu.memory_space<vmem>>, %arg4: memref<4x64xf32, #tpu.memory_space<vmem>>, %arg5: memref<4x1xf32, #tpu.memory_space<vmem>>, %arg6: memref<12x4xf32, #tpu.memory_space<vmem>>, %arg7: memref<12x1xf32, #tpu.memory_space<vmem>>, %arg8: memref<12x12xf32, #tpu.memory_space<vmem>>, %arg9: memref<12x1xf32, #tpu.memory_space<vmem>>, %arg10: memref<12x128xf32, #tpu.memory_space<vmem>>) attributes {dimension_semantics = [#tpu.dimension_semantics<parallel>], iteration_bounds = array<i64: 1>, scalar_prefetch = 0 : i64, scratch_operands = 0 : i64, tpu.core_type = #tpu.core_type<tc>, window_params = [{transform_indices = @transform_0, window_bounds = array<i64: 12, 128>}, {pipeline_mode = #tpu.pipeline_mode<synchronous>, transform_indices = @transform_1, window_bounds = array<i64: 64, 12>}, {pipeline_mode = #tpu.pipeline_mode<synchronous>, transform_indices = @transform_2, window_bounds = array<i64: 64, 1>}, {pipeline_mode = #tpu.pipeline_mode<synchronous>, transform_indices = @transform_3, window_bounds = array<i64: 4, 64>}, {pipeline_mode = #tpu.pipeline_mode<synchronous>, transform_indices = @transform_4, window_bounds = array<i64: 4, 1>}, {pipeline_mode = #tpu.pipeline_mode<synchronous>, transform_indices = @transform_5, window_bounds = array<i64: 12, 4>}, {pipeline_mode = #tpu.pipeline_mode<synchronous>, transform_indices = @transform_6, window_bounds = array<i64: 12, 1>}, {pipeline_mode = #tpu.pipeline_mode<synchronous>, transform_indices = @transform_7, window_bounds = array<i64: 12, 12>}, {pipeline_mode = #tpu.pipeline_mode<synchronous>, transform_indices = @transform_8, window_bounds = array<i64: 12, 1>}, {transform_indices = @transform_9, window_bounds = array<i64: 12, 128>}]} {
    %c0 = arith.constant 0 : index
    %c0_0 = arith.constant 0 : index
    %0 = vector.load %arg1[%c0, %c0_0] : memref<12x128xf32, #tpu.memory_space<vmem>>, vector<12x128xf32>
    %c0_1 = arith.constant 0 : index
    %c0_2 = arith.constant 0 : index
    %1 = vector.load %arg2[%c0_1, %c0_2] : memref<64x12xf32, #tpu.memory_space<vmem>>, vector<64x12xf32>
    %cst = arith.constant dense<0.000000e+00> : vector<64x128xf32>
    %2 = tpu.matmul %1, %0, %cst {dimension_numbers = #tpu.dot_dimension_numbers<[1], [0], [0], [1], [0, 0, 1, 1], [], []>} : vector<64x12xf32>, vector<12x128xf32>, vector<64x128xf32> -> vector<64x128xf32>
    %c0_3 = arith.constant 0 : index
    %c0_4 = arith.constant 0 : index
    %3 = vector.load %arg3[%c0_3, %c0_4] : memref<64x1xf32, #tpu.memory_space<vmem>>, vector<64x1xf32>
    %4 = vector.broadcast %3 : vector<64x1xf32> to vector<64x128xf32>
    %5 = arith.addf %2, %4 : vector<64x128xf32>
    %cst_5 = arith.constant 0.000000e+00 : f32
    %6 = vector.broadcast %cst_5 : f32 to vector<64x128xf32>
    %7 = arith.maximumf %5, %6 : vector<64x128xf32>
    %c0_6 = arith.constant 0 : index
    %c0_7 = arith.constant 0 : index
    %8 = vector.load %arg4[%c0_6, %c0_7] : memref<4x64xf32, #tpu.memory_space<vmem>>, vector<4x64xf32>
    %cst_8 = arith.constant dense<0.000000e+00> : vector<4x128xf32>
    %9 = tpu.matmul %8, %7, %cst_8 {dimension_numbers = #tpu.dot_dimension_numbers<[1], [0], [0], [1], [0, 0, 1, 1], [], []>} : vector<4x64xf32>, vector<64x128xf32>, vector<4x128xf32> -> vector<4x128xf32>
    %c0_9 = arith.constant 0 : index
    %c0_10 = arith.constant 0 : index
    %10 = vector.load %arg5[%c0_9, %c0_10] : memref<4x1xf32, #tpu.memory_space<vmem>>, vector<4x1xf32>
    %11 = vector.broadcast %10 : vector<4x1xf32> to vector<4x128xf32>
    %12 = arith.addf %9, %11 : vector<4x128xf32>
    %13 = math.tanh %12 : vector<4x128xf32>
    %c0_11 = arith.constant 0 : index
    %c0_12 = arith.constant 0 : index
    %14 = vector.load %arg6[%c0_11, %c0_12] : memref<12x4xf32, #tpu.memory_space<vmem>>, vector<12x4xf32>
    %cst_13 = arith.constant dense<0.000000e+00> : vector<12x128xf32>
    %15 = tpu.matmul %14, %13, %cst_13 {dimension_numbers = #tpu.dot_dimension_numbers<[1], [0], [0], [1], [0, 0, 1, 1], [], []>} : vector<12x4xf32>, vector<4x128xf32>, vector<12x128xf32> -> vector<12x128xf32>
    %c0_14 = arith.constant 0 : index
    %c0_15 = arith.constant 0 : index
    %16 = vector.load %arg7[%c0_14, %c0_15] : memref<12x1xf32, #tpu.memory_space<vmem>>, vector<12x1xf32>
    %17 = vector.broadcast %16 : vector<12x1xf32> to vector<12x128xf32>
    %18 = arith.addf %15, %17 : vector<12x128xf32>
    %cst_16 = arith.constant 0.000000e+00 : f32
    %19 = vector.broadcast %cst_16 : f32 to vector<12x128xf32>
    %20 = arith.maximumf %18, %19 : vector<12x128xf32>
    %c0_17 = arith.constant 0 : index
    %c0_18 = arith.constant 0 : index
    %21 = vector.load %arg8[%c0_17, %c0_18] : memref<12x12xf32, #tpu.memory_space<vmem>>, vector<12x12xf32>
    %cst_19 = arith.constant dense<0.000000e+00> : vector<12x128xf32>
    %22 = tpu.matmul %21, %20, %cst_19 {dimension_numbers = #tpu.dot_dimension_numbers<[1], [0], [0], [1], [0, 0, 1, 1], [], []>} : vector<12x12xf32>, vector<12x128xf32>, vector<12x128xf32> -> vector<12x128xf32>
    %c0_20 = arith.constant 0 : index
    %c0_21 = arith.constant 0 : index
    %23 = vector.load %arg9[%c0_20, %c0_21] : memref<12x1xf32, #tpu.memory_space<vmem>>, vector<12x1xf32>
    %24 = vector.broadcast %23 : vector<12x1xf32> to vector<12x128xf32>
    %25 = arith.addf %22, %24 : vector<12x128xf32>
    %cst_22 = arith.constant 0.000000e+00 : f32
    %26 = vector.broadcast %cst_22 : f32 to vector<12x128xf32>
    %27 = arith.subf %26, %25 : vector<12x128xf32>
    %28 = math.exp %27 : vector<12x128xf32>
    %cst_23 = arith.constant 1.000000e+00 : f32
    %29 = vector.broadcast %cst_23 : f32 to vector<12x128xf32>
    %30 = arith.addf %29, %28 : vector<12x128xf32>
    %31 = tpu.reciprocal %30 {approx = true} : vector<12x128xf32> -> vector<12x128xf32>
    %c0_24 = arith.constant 0 : index
    %c0_25 = arith.constant 0 : index
    %32 = vector.load %arg10[%c0_24, %c0_25] : memref<12x128xf32, #tpu.memory_space<vmem>>, vector<12x128xf32>
    tpu.vector_store %arg10[%c0_24, %c0_25], %31 {strides = array<i32>} : memref<12x128xf32, #tpu.memory_space<vmem>>, vector<12x128xf32>,
    return
  }
  func.func @transform_0(%arg0: i32) -> (i32, i32) {
    %c0_i32 = arith.constant 0 : i32
    %c0_i32_0 = arith.constant 0 : i32
    return %c0_i32, %arg0 : i32, i32
  }
  func.func @transform_1(%arg0: i32) -> (i32, i32) {
    %c0_i32 = arith.constant 0 : i32
    %c0_i32_0 = arith.constant 0 : i32
    %c0_i32_1 = arith.constant 0 : i32
    return %c0_i32, %c0_i32_0 : i32, i32
  }
  func.func @transform_2(%arg0: i32) -> (i32, i32) {
    %c0_i32 = arith.constant 0 : i32
    %c0_i32_0 = arith.constant 0 : i32
    %c0_i32_1 = arith.constant 0 : i32
    return %c0_i32, %c0_i32_0 : i32, i32
  }
  func.func @transform_3(%arg0: i32) -> (i32, i32) {
    %c0_i32 = arith.constant 0 : i32
    %c0_i32_0 = arith.constant 0 : i32
    %c0_i32_1 = arith.constant 0 : i32
    return %c0_i32, %c0_i32_0 : i32, i32
  }
  func.func @transform_4(%arg0: i32) -> (i32, i32) {
    %c0_i32 = arith.constant 0 : i32
    %c0_i32_0 = arith.constant 0 : i32
    %c0_i32_1 = arith.constant 0 : i32
    return %c0_i32, %c0_i32_0 : i32, i32
  }
  func.func @transform_5(%arg0: i32) -> (i32, i32) {
    %c0_i32 = arith.constant 0 : i32
    %c0_i32_0 = arith.constant 0 : i32
    %c0_i32_1 = arith.constant 0 : i32
    return %c0_i32, %c0_i32_0 : i32, i32
  }
  func.func @transform_6(%arg0: i32) -> (i32, i32) {
    %c0_i32 = arith.constant 0 : i32
    %c0_i32_0 = arith.constant 0 : i32
    %c0_i32_1 = arith.constant 0 : i32
    return %c0_i32, %c0_i32_0 : i32, i32
  }
  func.func @transform_7(%arg0: i32) -> (i32, i32) {
    %c0_i32 = arith.constant 0 : i32
    %c0_i32_0 = arith.constant 0 : i32
    %c0_i32_1 = arith.constant 0 : i32
    return %c0_i32, %c0_i32_0 : i32, i32
  }
  func.func @transform_8(%arg0: i32) -> (i32, i32) {
    %c0_i32 = arith.constant 0 : i32
    %c0_i32_0 = arith.constant 0 : i32
    %c0_i32_1 = arith.constant 0 : i32
    return %c0_i32, %c0_i32_0 : i32, i32
  }
  func.func @transform_9(%arg0: i32) -> (i32, i32) {
    %c0_i32 = arith.constant 0 : i32
    %c0_i32_0 = arith.constant 0 : i32
    return %c0_i32, %arg0 : i32, i32
  }
}

</mosaic_0001>

<llo_original>
// kernel: autoencoder_forward.1
$region0: #{autoencoder_forward.1}
  #allocation0 [shape = 'u32[]', space=smem, size = 0x4, offset = 0x4, fixed_abs, tag = 'smem constant byte address 0x4 - core index']
  #allocation1 [shape = 'u32[144,128]{1,0:T(1,128)}', space=vmem, size = 0x12000, scoped, tag = 'internal scratch']
  %s0 = inlined_call_operand.vmem [shape: f32[12,128], index: 0, kind: input, shape index: {}]
  %s1 = inlined_call_operand.vmem [shape: f32[64,12], index: 1, kind: input, shape index: {}]
  %s2 = inlined_call_operand.vmem [shape: f32[64,1], index: 2, kind: input, shape index: {}]
  %s3 = inlined_call_operand.vmem [shape: f32[4,64], index: 3, kind: input, shape index: {}]
  %s4 = inlined_call_operand.vmem [shape: f32[4,1], index: 4, kind: input, shape index: {}]
  %s5 = inlined_call_operand.vmem [shape: f32[12,4], index: 5, kind: input, shape index: {}]
  %s6 = inlined_call_operand.vmem [shape: f32[12,1], index: 6, kind: input, shape index: {}]
  %s7 = inlined_call_operand.vmem [shape: f32[12,12], index: 7, kind: input, shape index: {}]
  %s8 = inlined_call_operand.vmem [shape: f32[12,1], index: 8, kind: input, shape index: {}]
  %s9 = inlined_call_operand.vmem [shape: f32[12,128], index: 9, kind: output, shape index: {}]
  %s10 = sld [smem:[#allocation0]]
  $region46: #{autoencoder_forward.1} parent=0
    _
  %s12 = ssub.s32 1, %s10
  %s13 = scalar_select 0, %s12, %s10
  // Predicated region
  $region2: #{autoencoder_forward.1} parent=0 // pred_check
    _
  $region3: #{autoencoder_forward.1} parent=0 // pred_check_branch
    %15 = sbr.rel (0) target = $region5
  $region4: #{autoencoder_forward.1} parent=0 // pred_region
    _
  $region5: #{autoencoder_forward.1} parent=0 // pred_fallthru
    _
  // Predicated region
  $region6: #{autoencoder_forward.1} parent=0 // pred_check
    _
  $region7: #{autoencoder_forward.1} parent=0 // pred_check_branch
    %17 = sbr.rel (0) target = $region9
  $region8: #{autoencoder_forward.1} parent=0 // pred_region
    _
  $region9: #{autoencoder_forward.1} parent=0 // pred_fallthru
    _
  // Predicated region
  $region10: #{autoencoder_forward.1} parent=0 // pred_check
    _
  $region11: #{autoencoder_forward.1} parent=0 // pred_check_branch
    %19 = sbr.rel (0) target = $region13
  $region12: #{autoencoder_forward.1} parent=0 // pred_region
    _
  $region13: #{autoencoder_forward.1} parent=0 // pred_fallthru
    _
  // Predicated region
  $region14: #{autoencoder_forward.1} parent=0 // pred_check
    _
  $region15: #{autoencoder_forward.1} parent=0 // pred_check_branch
    %21 = sbr.rel (0) target = $region17
  $region16: #{autoencoder_forward.1} parent=0 // pred_region
    _
  $region17: #{autoencoder_forward.1} parent=0 // pred_fallthru
    _
  // Predicated region
  $region18: #{autoencoder_forward.1} parent=0 // pred_check
    _
  $region19: #{autoencoder_forward.1} parent=0 // pred_check_branch
    %23 = sbr.rel (0) target = $region21
  $region20: #{autoencoder_forward.1} parent=0 // pred_region
    _
  $region21: #{autoencoder_forward.1} parent=0 // pred_fallthru
    _
  // Predicated region
  $region22: #{autoencoder_forward.1} parent=0 // pred_check
    _
  $region23: #{autoencoder_forward.1} parent=0 // pred_check_branch
    %25 = sbr.rel (0) target = $region25
  $region24: #{autoencoder_forward.1} parent=0 // pred_region
    _
  $region25: #{autoencoder_forward.1} parent=0 // pred_fallthru
    _
  // Predicated region
  $region26: #{autoencoder_forward.1} parent=0 // pred_check
    _
  $region27: #{autoencoder_forward.1} parent=0 // pred_check_branch
    %27 = sbr.rel (0) target = $region29
  $region28: #{autoencoder_forward.1} parent=0 // pred_region
    _
  $region29: #{autoencoder_forward.1} parent=0 // pred_fallthru
    _
  // Predicated region
  $region30: #{autoencoder_forward.1} parent=0 // pred_check
    _
  $region31: #{autoencoder_forward.1} parent=0 // pred_check_branch
    %29 = sbr.rel (0) target = $region33
  $region32: #{autoencoder_forward.1} parent=0 // pred_region
    _
  $region33: #{autoencoder_forward.1} parent=0 // pred_fallthru
    _
  // Predicated region
  $region34: #{autoencoder_forward.1} parent=0 // pred_check
    _
  $region35: #{autoencoder_forward.1} parent=0 // pred_check_branch
    %31 = sbr.rel (0) target = $region37
  $region36: #{autoencoder_forward.1} parent=0 // pred_region
    _
  $region37: #{autoencoder_forward.1} parent=0 // pred_fallthru
    _
  %v32 = vld [vmem:[%s0] sm:$0xff]
  %v33 = vld [vmem:[%s0 + $0x8] sm:$0xf]
  %v34 = vld [vmem:[%s1] sm:$0xff]
  %v35 = vld [vmem:[%s1 + $0x8] sm:$0xff]
  %v36 = vld [vmem:[%s1 + $0x10] sm:$0xff]
  %v37 = vld [vmem:[%s1 + $0x18] sm:$0xff]
  %v38 = vld [vmem:[%s1 + $0x20] sm:$0xff]
  %v39 = vld [vmem:[%s1 + $0x28] sm:$0xff]
  %v40 = vld [vmem:[%s1 + $0x30] sm:$0xff]
  %v41 = vld [vmem:[%s1 + $0x38] sm:$0xff]
  %v42 = vld [vmem:[%s2] sm:$0xff]
  %v43 = vld [vmem:[%s2 + $0x8] sm:$0xff]
  %v44 = vld [vmem:[%s2 + $0x10] sm:$0xff]
  %v45 = vld [vmem:[%s2 + $0x18] sm:$0xff]
  %v46 = vld [vmem:[%s2 + $0x20] sm:$0xff]
  %v47 = vld [vmem:[%s2 + $0x28] sm:$0xff]
  %v48 = vld [vmem:[%s2 + $0x30] sm:$0xff]
  %v49 = vld [vmem:[%s2 + $0x38] sm:$0xff]
  %51 = vset.pattern.permute.xlu0 0
  %52 = vperm.xlu0 %51, %v42
  %v53 = vpop.permute.xlu0 %52
  %56 = vset.pattern.permute.xlu0 0
  %57 = vperm.xlu0 %56, %v43
  %v58 = vpop.permute.xlu0 %57
  %61 = vset.pattern.permute.xlu0 0
  %62 = vperm.xlu0 %61, %v44
  %v63 = vpop.permute.xlu0 %62
  %66 = vset.pattern.permute.xlu0 0
  %67 = vperm.xlu0 %66, %v45
  %v68 = vpop.permute.xlu0 %67
  %71 = vset.pattern.permute.xlu0 0
  %72 = vperm.xlu0 %71, %v46
  %v73 = vpop.permute.xlu0 %72
  %76 = vset.pattern.permute.xlu0 0
  %77 = vperm.xlu0 %76, %v47
  %v78 = vpop.permute.xlu0 %77
  %81 = vset.pattern.permute.xlu0 0
  %82 = vperm.xlu0 %81, %v48
  %v83 = vpop.permute.xlu0 %82
  %86 = vset.pattern.permute.xlu0 0
  %87 = vperm.xlu0 %86, %v49
  %v88 = vpop.permute.xlu0 %87
  %vm90 = vcmask 97280
  %v92 = vsel %vm90, %v34, 0
  %v95 = vsel %vm90, %v35, 0
  %v98 = vsel %vm90, %v36, 0
  %v101 = vsel %vm90, %v37, 0
  %v104 = vsel %vm90, %v38, 0
  %v107 = vsel %vm90, %v39, 0
  %v110 = vsel %vm90, %v40, 0
  %v113 = vsel %vm90, %v41, 0
  %vm115 = vcmask 1043456
  %v117 = vsel %vm115, %v33, 0
  %119 = vmatprep.subr.mxu0 0.0
  %120 = vmatpush1.msra.mxu0 %v32
  %121 = vmatprep.subr.mxu0 0.0
  %122 = vmatpush1.msra.mxu0 %v117
  %123 = vmatprep.subr.mxu0 0.0
  %124 = vmatpush1.msra.mxu0 0.0
  %125 = vmatprep.subr.mxu0 0.0
  %126 = vmatpush1.msra.mxu0 0.0
  %127 = vmatprep.subr.mxu0 0.0
  %128 = vmatpush1.msra.mxu0 0.0
  %129 = vmatprep.subr.mxu0 0.0
  %130 = vmatpush1.msra.mxu0 0.0
  %131 = vmatprep.subr.mxu0 0.0
  %132 = vmatpush1.msra.mxu0 0.0
  %133 = vmatprep.subr.mxu0 0.0
  %134 = vmatpush1.msra.mxu0 0.0
  %135 = vmatprep.subr.mxu0 0.0
  %136 = vmatpush1.msra.mxu0 0.0
  %137 = vmatprep.subr.mxu0 0.0
  %138 = vmatpush1.msra.mxu0 0.0
  %139 = vmatprep.subr.mxu0 0.0
  %140 = vmatpush1.msra.mxu0 0.0
  %141 = vmatprep.subr.mxu0 0.0
  %142 = vmatpush1.msra.mxu0 0.0
  %143 = vmatprep.subr.mxu0 0.0
  %144 = vmatpush1.msra.mxu0 0.0
  %145 = vmatprep.subr.mxu0 0.0
  %146 = vmatpush1.msra.mxu0 0.0
  %147 = vmatprep.subr.mxu0 0.0
  %148 = vmatpush1.msra.mxu0 0.0
  %149 = vmatprep.subr.mxu0 0.0
  %150 = vmatpush1.msra.mxu0 0.0
  %151 = vmatprep.subr.mxu0 0.0
  %152 = vmatpush1.msra.mxu0 0.0
  %153 = vmatprep.subr.mxu0 0.0
  %154 = vmatpush1.msra.mxu0 0.0
  %155 = vmatprep.subr.mxu0 0.0
  %156 = vmatpush1.msra.mxu0 0.0
  %157 = vmatprep.subr.mxu0 0.0
  %158 = vmatpush1.msra.mxu0 0.0
  %159 = vmatprep.subr.mxu0 0.0
  %160 = vmatpush1.msra.mxu0 0.0
  %161 = vmatprep.subr.mxu0 0.0
  %162 = vmatpush1.msra.mxu0 0.0
  %163 = vmatprep.subr.mxu0 0.0
  %164 = vmatpush1.msra.mxu0 0.0
  %165 = vmatprep.subr.mxu0 0.0
  %166 = vmatpush1.msra.mxu0 0.0
  %167 = vmatprep.subr.mxu0 0.0
  %168 = vmatpush1.msra.mxu0 0.0
  %169 = vmatprep.subr.mxu0 0.0
  %170 = vmatpush1.msra.mxu0 0.0
  %171 = vmatprep.subr.mxu0 0.0
  %172 = vmatpush1.msra.mxu0 0.0
  %173 = vmatprep.subr.mxu0 0.0
  %174 = vmatpush1.msra.mxu0 0.0
  %175 = vmatprep.subr.mxu0 0.0
  %176 = vmatpush1.msra.mxu0 0.0
  %177 = vmatprep.subr.mxu0 0.0
  %178 = vmatpush1.msra.mxu0 0.0
  %179 = vmatprep.subr.mxu0 0.0
  %180 = vmatpush1.msra.mxu0 0.0
  %181 = vmatprep.subr.mxu0 0.0
  %182 = vmatpush1.msra.mxu0 0.0
  %183 = vmatprep.mubr.f32.mxu0 0.0
  %184 = vmatmul.mubr.f32.gmra.mrb[0].mxu0 %v92
  %v185 = vpop.f32.mrb[0].mxu0
  %v186 = vadd.f32 %v53, %v185
  %v187 = vpop.f32.mrb[0].mxu0
  %188 = vmatprep.mubr.f32.mxu0 0.0
  %189 = vmatmul.mubr.f32.gmra.mrb[0].mxu0 %v95
  %v190 = vpop.f32.mrb[0].mxu0
  %v191 = vadd.f32 %v58, %v190
  %v192 = vpop.f32.mrb[0].mxu0
  %193 = vmatprep.mubr.f32.mxu0 0.0
  %194 = vmatmul.mubr.f32.gmra.mrb[0].mxu0 %v98
  %v195 = vpop.f32.mrb[0].mxu0
  %v196 = vadd.f32 %v63, %v195
  %v197 = vpop.f32.mrb[0].mxu0
  %198 = vmatprep.mubr.f32.mxu0 0.0
  %199 = vmatmul.mubr.f32.gmra.mrb[0].mxu0 %v101
  %v200 = vpop.f32.mrb[0].mxu0
  %v201 = vadd.f32 %v68, %v200
  %v202 = vpop.f32.mrb[0].mxu0
  %203 = vmatprep.mubr.f32.mxu0 0.0
  %204 = vmatmul.mubr.f32.gmra.mrb[0].mxu0 %v104
  %v205 = vpop.f32.mrb[0].mxu0
  %v206 = vadd.f32 %v73, %v205
  %v207 = vpop.f32.mrb[0].mxu0
  %208 = vmatprep.mubr.f32.mxu0 0.0
  %209 = vmatmul.mubr.f32.gmra.mrb[0].mxu0 %v107
  %v210 = vpop.f32.mrb[0].mxu0
  %v211 = vadd.f32 %v78, %v210
  %v212 = vpop.f32.mrb[0].mxu0
  %213 = vmatprep.mubr.f32.mxu0 0.0
  %214 = vmatmul.mubr.f32.gmra.mrb[0].mxu0 %v110
  %v215 = vpop.f32.mrb[0].mxu0
  %v216 = vadd.f32 %v83, %v215
  %v217 = vpop.f32.mrb[0].mxu0
  %218 = vmatprep.mubr.f32.mxu0 0.0
  %219 = vmatmul.mubr.f32.gmra.mrb[0].mxu0 %v113
  %v220 = vpop.f32.mrb[0].mxu0
  %v221 = vadd.f32 %v88, %v220
  %v222 = vpop.f32.mrb[0].mxu0
  %223 = vdwg.mxu0
  %v224 = vmax.f32 %v186, 0.0
  %v225 = vmax.f32 %v191, 0.0
  %v226 = vmax.f32 %v196, 0.0
  %v227 = vmax.f32 %v201, 0.0
  %v228 = vmax.f32 %v206, 0.0
  %v229 = vmax.f32 %v211, 0.0
  %v230 = vmax.f32 %v216, 0.0
  %v231 = vmax.f32 %v221, 0.0
  %v232 = vld [vmem:[%s3] sm:$0xf]
  %v233 = vld [vmem:[%s4] sm:$0xf]
  %235 = vset.pattern.permute.xlu0 0
  %236 = vperm.xlu0 %235, %v233
  %v237 = vpop.permute.xlu0 %236
  %vm239 = vcmask 523264
  %v241 = vsel %vm239, %v232, 0
  %243 = vmatprep.subr.mxu0 0.0
  %244 = vmatpush1.msra.mxu0 %v224
  %245 = vmatprep.subr.mxu0 0.0
  %246 = vmatpush1.msra.mxu0 %v225
  %247 = vmatprep.subr.mxu0 0.0
  %248 = vmatpush1.msra.mxu0 %v226
  %249 = vmatprep.subr.mxu0 0.0
  %250 = vmatpush1.msra.mxu0 %v227
  %251 = vmatprep.subr.mxu0 0.0
  %252 = vmatpush1.msra.mxu0 %v228
  %253 = vmatprep.subr.mxu0 0.0
  %254 = vmatpush1.msra.mxu0 %v229
  %255 = vmatprep.subr.mxu0 0.0
  %256 = vmatpush1.msra.mxu0 %v230
  %257 = vmatprep.subr.mxu0 0.0
  %258 = vmatpush1.msra.mxu0 %v231
  %259 = vmatprep.subr.mxu0 0.0
  %260 = vmatpush1.msra.mxu0 0.0
  %261 = vmatprep.subr.mxu0 0.0
  %262 = vmatpush1.msra.mxu0 0.0
  %263 = vmatprep.subr.mxu0 0.0
  %264 = vmatpush1.msra.mxu0 0.0
  %265 = vmatprep.subr.mxu0 0.0
  %266 = vmatpush1.msra.mxu0 0.0
  %267 = vmatprep.subr.mxu0 0.0
  %268 = vmatpush1.msra.mxu0 0.0
  %269 = vmatprep.subr.mxu0 0.0
  %270 = vmatpush1.msra.mxu0 0.0
  %271 = vmatprep.subr.mxu0 0.0
  %272 = vmatpush1.msra.mxu0 0.0
  %273 = vmatprep.subr.mxu0 0.0
  %274 = vmatpush1.msra.mxu0 0.0
  %275 = vmatprep.subr.mxu0 0.0
  %276 = vmatpush1.msra.mxu0 0.0
  %277 = vmatprep.subr.mxu0 0.0
  %278 = vmatpush1.msra.mxu0 0.0
  %279 = vmatprep.subr.mxu0 0.0
  %280 = vmatpush1.msra.mxu0 0.0
  %281 = vmatprep.subr.mxu0 0.0
  %282 = vmatpush1.msra.mxu0 0.0
  %283 = vmatprep.subr.mxu0 0.0
  %284 = vmatpush1.msra.mxu0 0.0
  %285 = vmatprep.subr.mxu0 0.0
  %286 = vmatpush1.msra.mxu0 0.0
  %287 = vmatprep.subr.mxu0 0.0
  %288 = vmatpush1.msra.mxu0 0.0
  %289 = vmatprep.subr.mxu0 0.0
  %290 = vmatpush1.msra.mxu0 0.0
  %291 = vmatprep.subr.mxu0 0.0
  %292 = vmatpush1.msra.mxu0 0.0
  %293 = vmatprep.subr.mxu0 0.0
  %294 = vmatpush1.msra.mxu0 0.0
  %295 = vmatprep.subr.mxu0 0.0
  %296 = vmatpush1.msra.mxu0 0.0
  %297 = vmatprep.subr.mxu0 0.0
  %298 = vmatpush1.msra.mxu0 0.0
  %299 = vmatprep.subr.mxu0 0.0
  %300 = vmatpush1.msra.mxu0 0.0
  %301 = vmatprep.subr.mxu0 0.0
  %302 = vmatpush1.msra.mxu0 0.0
  %303 = vmatprep.subr.mxu0 0.0
  %304 = vmatpush1.msra.mxu0 0.0
  %305 = vmatprep.subr.mxu0 0.0
  %306 = vmatpush1.msra.mxu0 0.0
  %307 = vmatprep.mubr.f32.mxu0 0.0
  %308 = vmatmul.mubr.f32.gmra.mrb[0].mxu0 %v241
  %v309 = vpop.f32.mrb[0].mxu0
  %v310 = vadd.f32 %v237, %v309
  %v311 = vpop.f32.mrb[0].mxu0
  %312 = vdwg.mxu0
  %v313 = vtanh.pop %v310
  %v314 = vld [vmem:[%s5] sm:$0xff]
  %v315 = vld [vmem:[%s5 + $0x8] sm:$0xf]
  %v316 = vld [vmem:[%s6] sm:$0xff]
  %v317 = vld [vmem:[%s6 + $0x8] sm:$0xf]
  %319 = vset.pattern.permute.xlu0 0
  %320 = vperm.xlu0 %319, %v316
  %v321 = vpop.permute.xlu0 %320
  %324 = vset.pattern.permute.xlu0 0
  %325 = vperm.xlu0 %324, %v317
  %v326 = vpop.permute.xlu0 %325
  %vm328 = vcmask 31744
  %v330 = vsel %vm328, %v314, 0
  %v333 = vsel %vm328, %v315, 0
  %v336 = vsel %vm115, %v313, 0
  %338 = vmatprep.subr.mxu0 0.0
  %339 = vmatpush1.msra.mxu0 %v336
  %340 = vmatprep.subr.mxu0 0.0
  %341 = vmatpush1.msra.mxu0 0.0
  %342 = vmatprep.subr.mxu0 0.0
  %343 = vmatpush1.msra.mxu0 0.0
  %344 = vmatprep.subr.mxu0 0.0
  %345 = vmatpush1.msra.mxu0 0.0
  %346 = vmatprep.subr.mxu0 0.0
  %347 = vmatpush1.msra.mxu0 0.0
  %348 = vmatprep.subr.mxu0 0.0
  %349 = vmatpush1.msra.mxu0 0.0
  %350 = vmatprep.subr.mxu0 0.0
  %351 = vmatpush1.msra.mxu0 0.0
  %352 = vmatprep.subr.mxu0 0.0
  %353 = vmatpush1.msra.mxu0 0.0
  %354 = vmatprep.subr.mxu0 0.0
  %355 = vmatpush1.msra.mxu0 0.0
  %356 = vmatprep.subr.mxu0 0.0
  %357 = vmatpush1.msra.mxu0 0.0
  %358 = vmatprep.subr.mxu0 0.0
  %359 = vmatpush1.msra.mxu0 0.0
  %360 = vmatprep.subr.mxu0 0.0
  %361 = vmatpush1.msra.mxu0 0.0
  %362 = vmatprep.subr.mxu0 0.0
  %363 = vmatpush1.msra.mxu0 0.0
  %364 = vmatprep.subr.mxu0 0.0
  %365 = vmatpush1.msra.mxu0 0.0
  %366 = vmatprep.subr.mxu0 0.0
  %367 = vmatpush1.msra.mxu0 0.0
  %368 = vmatprep.subr.mxu0 0.0
  %369 = vmatpush1.msra.mxu0 0.0
  %370 = vmatprep.subr.mxu0 0.0
  %371 = vmatpush1.msra.mxu0 0.0
  %372 = vmatprep.subr.mxu0 0.0
  %373 = vmatpush1.msra.mxu0 0.0
  %374 = vmatprep.subr.mxu0 0.0
  %375 = vmatpush1.msra.mxu0 0.0
  %376 = vmatprep.subr.mxu0 0.0
  %377 = vmatpush1.msra.mxu0 0.0
  %378 = vmatprep.subr.mxu0 0.0
  %379 = vmatpush1.msra.mxu0 0.0
  %380 = vmatprep.subr.mxu0 0.0
  %381 = vmatpush1.msra.mxu0 0.0
  %382 = vmatprep.subr.mxu0 0.0
  %383 = vmatpush1.msra.mxu0 0.0
  %384 = vmatprep.subr.mxu0 0.0
  %385 = vmatpush1.msra.mxu0 0.0
  %386 = vmatprep.subr.mxu0 0.0
  %387 = vmatpush1.msra.mxu0 0.0
  %388 = vmatprep.subr.mxu0 0.0
  %389 = vmatpush1.msra.mxu0 0.0
  %390 = vmatprep.subr.mxu0 0.0
  %391 = vmatpush1.msra.mxu0 0.0
  %392 = vmatprep.subr.mxu0 0.0
  %393 = vmatpush1.msra.mxu0 0.0
  %394 = vmatprep.subr.mxu0 0.0
  %395 = vmatpush1.msra.mxu0 0.0
  %396 = vmatprep.subr.mxu0 0.0
  %397 = vmatpush1.msra.mxu0 0.0
  %398 = vmatprep.subr.mxu0 0.0
  %399 = vmatpush1.msra.mxu0 0.0
  %400 = vmatprep.subr.mxu0 0.0
  %401 = vmatpush1.msra.mxu0 0.0
  %402 = vmatprep.mubr.f32.mxu0 0.0
  %403 = vmatmul.mubr.f32.gmra.mrb[0].mxu0 %v330
  %v404 = vpop.f32.mrb[0].mxu0
  %v405 = vadd.f32 %v321, %v404
  %v406 = vpop.f32.mrb[0].mxu0
  %407 = vmatprep.mubr.f32.mxu0 0.0
  %408 = vmatmul.mubr.f32.gmra.mrb[0].mxu0 %v333
  %v409 = vpop.f32.mrb[0].mxu0
  %v410 = vadd.f32 %v326, %v409
  %v411 = vpop.f32.mrb[0].mxu0
  %412 = vdwg.mxu0
  %v413 = vmax.f32 %v405, 0.0
  %v414 = vmax.f32 %v410, 0.0
  %v415 = vld [vmem:[%s7] sm:$0xff]
  %v416 = vld [vmem:[%s7 + $0x8] sm:$0xf]
  %v417 = vld [vmem:[%s8] sm:$0xff]
  %v418 = vld [vmem:[%s8 + $0x8] sm:$0xf]
  %420 = vset.pattern.permute.xlu0 0
  %421 = vperm.xlu0 %420, %v417
  %v422 = vpop.permute.xlu0 %421
  %425 = vset.pattern.permute.xlu0 0
  %426 = vperm.xlu0 %425, %v418
  %v427 = vpop.permute.xlu0 %426
  %v430 = vsel %vm90, %v415, 0
  %v433 = vsel %vm90, %v416, 0
  %v436 = vsel %vm115, %v414, 0
  %438 = vmatprep.subr.mxu0 0.0
  %439 = vmatpush1.msra.mxu0 %v413
  %440 = vmatprep.subr.mxu0 0.0
  %441 = vmatpush1.msra.mxu0 %v436
  %442 = vmatprep.subr.mxu0 0.0
  %443 = vmatpush1.msra.mxu0 0.0
  %444 = vmatprep.subr.mxu0 0.0
  %445 = vmatpush1.msra.mxu0 0.0
  %446 = vmatprep.subr.mxu0 0.0
  %447 = vmatpush1.msra.mxu0 0.0
  %448 = vmatprep.subr.mxu0 0.0
  %449 = vmatpush1.msra.mxu0 0.0
  %450 = vmatprep.subr.mxu0 0.0
  %451 = vmatpush1.msra.mxu0 0.0
  %452 = vmatprep.subr.mxu0 0.0
  %453 = vmatpush1.msra.mxu0 0.0
  %454 = vmatprep.subr.mxu0 0.0
  %455 = vmatpush1.msra.mxu0 0.0
  %456 = vmatprep.subr.mxu0 0.0
  %457 = vmatpush1.msra.mxu0 0.0
  %458 = vmatprep.subr.mxu0 0.0
  %459 = vmatpush1.msra.mxu0 0.0
  %460 = vmatprep.subr.mxu0 0.0
  %461 = vmatpush1.msra.mxu0 0.0
  %462 = vmatprep.subr.mxu0 0.0
  %463 = vmatpush1.msra.mxu0 0.0
  %464 = vmatprep.subr.mxu0 0.0
  %465 = vmatpush1.msra.mxu0 0.0
  %466 = vmatprep.subr.mxu0 0.0
  %467 = vmatpush1.msra.mxu0 0.0
  %468 = vmatprep.subr.mxu0 0.0
  %469 = vmatpush1.msra.mxu0 0.0
  %470 = vmatprep.subr.mxu0 0.0
  %471 = vmatpush1.msra.mxu0 0.0
  %472 = vmatprep.subr.mxu0 0.0
  %473 = vmatpush1.msra.mxu0 0.0
  %474 = vmatprep.subr.mxu0 0.0
  %475 = vmatpush1.msra.mxu0 0.0
  %476 = vmatprep.subr.mxu0 0.0
  %477 = vmatpush1.msra.mxu0 0.0
  %478 = vmatprep.subr.mxu0 0.0
  %479 = vmatpush1.msra.mxu0 0.0
  %480 = vmatprep.subr.mxu0 0.0
  %481 = vmatpush1.msra.mxu0 0.0
  %482 = vmatprep.subr.mxu0 0.0
  %483 = vmatpush1.msra.mxu0 0.0
  %484 = vmatprep.subr.mxu0 0.0
  %485 = vmatpush1.msra.mxu0 0.0
  %486 = vmatprep.subr.mxu0 0.0
  %487 = vmatpush1.msra.mxu0 0.0
  %488 = vmatprep.subr.mxu0 0.0
  %489 = vmatpush1.msra.mxu0 0.0
  %490 = vmatprep.subr.mxu0 0.0
  %491 = vmatpush1.msra.mxu0 0.0
  %492 = vmatprep.subr.mxu0 0.0
  %493 = vmatpush1.msra.mxu0 0.0
  %494 = vmatprep.subr.mxu0 0.0
  %495 = vmatpush1.msra.mxu0 0.0
  %496 = vmatprep.subr.mxu0 0.0
  %497 = vmatpush1.msra.mxu0 0.0
  %498 = vmatprep.subr.mxu0 0.0
  %499 = vmatpush1.msra.mxu0 0.0
  %500 = vmatprep.subr.mxu0 0.0
  %501 = vmatpush1.msra.mxu0 0.0
  %502 = vmatprep.mubr.f32.mxu0 0.0
  %503 = vmatmul.mubr.f32.gmra.mrb[0].mxu0 %v430
  %v504 = vpop.f32.mrb[0].mxu0
  %v505 = vadd.f32 %v422, %v504
  %v506 = vpop.f32.mrb[0].mxu0
  %507 = vmatprep.mubr.f32.mxu0 0.0
  %508 = vmatmul.mubr.f32.gmra.mrb[0].mxu0 %v433
  %v509 = vpop.f32.mrb[0].mxu0
  %v510 = vadd.f32 %v427, %v509
  %v511 = vpop.f32.mrb[0].mxu0
  %512 = vdwg.mxu0
  %v513 = vsub.f32 0.0, %v505
  %v514 = vsub.f32 0.0, %v510
  %v515 = vmul.f32 %v513, 1.442695
  %v516 = vpow.pop %v515
  %v517 = vmul.f32 %v514, 1.442695
  %v518 = vpow.pop %v517
  %v519 = vadd.f32 %v516, 1.0
  %v520 = vadd.f32 %v518, 1.0
  %v521 = vrcp.pop %v519
  %v522 = vrcp.pop %v520
  %523 = vst [vmem:[%s9] sm:$0xff] %v521
  %524 = vst [vmem:[%s9 + $0x8] sm:$0xf] %v522
  // Predicated region
  $region38: #{autoencoder_forward.1} parent=0 // pred_check
    _
  $region39: #{autoencoder_forward.1} parent=0 // pred_check_branch
    %526 = sbr.rel (0) target = $region41
  $region40: #{autoencoder_forward.1} parent=0 // pred_region
    _
  $region41: #{autoencoder_forward.1} parent=0 // pred_fallthru
    _
  // Predicated region
  $region42: #{autoencoder_forward.1} parent=0 // pred_check
    _
  $region43: #{autoencoder_forward.1} parent=0 // pred_check_branch
    %528 = sbr.rel (0) target = $region45
  $region44: #{autoencoder_forward.1} parent=0 // pred_region
    _
  $region45: #{autoencoder_forward.1} parent=0 // pred_fallthru
    _

</llo_original>
